<compile_context>
chip_gen: v7x
topology: tpu7x:2x2x1
jax: 0.10.0
libtpu: 0.0.40
codegen_flags: <defaults>
</compile_context>

<pallas_src>
import functools
import numpy as np
import jax
import jax.numpy as jnp
from jax.experimental import pallas as pl
from jax.experimental.pallas import tpu as pltpu

LANES = 128


# ----------------------------- Pallas kernel ------------------------------
def _yolo_loss_kernel(pred_ref, ytrue_ref, acc_ref, *,
                      num_classes, num_anchors, label_smoothing,
                      anchor_wh, in_w, hw_count, s_rows, padded):
    """One grid step = one (batch*anchor) slice x one (S, 128) chunk of cells.

    pred_ref / ytrue_ref : (1, C, S, 128)  raw logits / targets, C = 5 + nc
    acc_ref              : (1, 4, S, 128)  partial sums [loc, cls, conf, n_pos],
                           resident across the hw-chunk grid axis.
    """
    ba = pl.program_id(0)                 # flattened (batch, anchor) index
    j = pl.program_id(1)                  # which S*128-cell chunk of the map
    a_idx = ba % num_anchors              # anchor index within anchors_mask[l]

    @pl.when(j == 0)
    def _init():
        acc_ref[...] = jnp.zeros_like(acc_ref)

    # scaled anchor (w, h) for this anchor (compile-time consts, scalar select)
    aw = jnp.float32(anchor_wh[0][0])
    ah = jnp.float32(anchor_wh[0][1])
    for k in range(1, num_anchors):
        aw = jnp.where(a_idx == k, jnp.float32(anchor_wh[k][0]), aw)
        ah = jnp.where(a_idx == k, jnp.float32(anchor_wh[k][1]), ah)

    # grid-cell coordinates of the (S, 128) cells handled by this step
    sub_i = jax.lax.broadcasted_iota(jnp.int32, (s_rows, LANES), 0)
    lane_i = jax.lax.broadcasted_iota(jnp.int32, (s_rows, LANES), 1)
    hw = (j * s_rows + sub_i) * LANES + lane_i          # flattened h * W + w
    hw_f = hw.astype(jnp.float32)
    # exact integer //, % via f32 (values << 2^24, margin 0.5/in_w >> rounding)
    gy = jnp.floor((hw_f + 0.5) * (1.0 / in_w))
    gx = hw_f - gy * jnp.float32(in_w)

    def _sigmoid(z):                      # tanh form: 1 EUP op (vs exp+recip)
        return 0.5 * jnp.tanh(0.5 * z) + 0.5

    def _bce_logits(z, t):                # stable BCE-with-logits, 2 EUP ops
        return jnp.maximum(z, 0.0) - z * t + jnp.log(1.0 + jnp.exp(-jnp.abs(z)))

    def _rcp(d):                          # approx recip + 1 Newton step
        r = pl.reciprocal(d, approx=True)
        return r * (2.0 - d * r)

    # ---- lazy per-channel reads keep live vregs low even for C = 85 ----
    x = _sigmoid(pred_ref[0, 0].astype(jnp.float32))
    y = _sigmoid(pred_ref[0, 1].astype(jnp.float32))
    w = _sigmoid(pred_ref[0, 2].astype(jnp.float32))
    h = _sigmoid(pred_ref[0, 3].astype(jnp.float32))
    z_conf = pred_ref[0, 4].astype(jnp.float32)         # objectness logits

    t_x = ytrue_ref[0, 0].astype(jnp.float32)
    t_y = ytrue_ref[0, 1].astype(jnp.float32)
    t_w = ytrue_ref[0, 2].astype(jnp.float32)
    t_h = ytrue_ref[0, 3].astype(jnp.float32)
    obj = ytrue_ref[0, 4].astype(jnp.float32)

    if padded:
        valid = hw < hw_count
        mask = (obj == 1.0) & valid
    else:
        mask = obj == 1.0

    # decoded prediction boxes (xywh, grid units)
    pb_x = x * 2.0 - 0.5 + gx
    pb_y = y * 2.0 - 0.5 + gy
    pb_w = (w * 2.0) ** 2 * aw
    pb_h = (h * 2.0) ** 2 * ah

    # ---- GIoU (every temp is a dense (S,128) plane) ----
    eps = 1e-7
    b1_min_x = pb_x - pb_w * 0.5
    b1_max_x = pb_x + pb_w * 0.5
    b1_min_y = pb_y - pb_h * 0.5
    b1_max_y = pb_y + pb_h * 0.5
    b2_min_x = t_x - t_w * 0.5
    b2_max_x = t_x + t_w * 0.5
    b2_min_y = t_y - t_h * 0.5
    b2_max_y = t_y + t_h * 0.5

    iw = jnp.maximum(jnp.minimum(b1_max_x, b2_max_x) - jnp.maximum(b1_min_x, b2_min_x), 0.0)
    ih = jnp.maximum(jnp.minimum(b1_max_y, b2_max_y) - jnp.maximum(b1_min_y, b2_min_y), 0.0)
    inter = iw * ih
    union = pb_w * pb_h + t_w * t_h - inter
    iou = inter * _rcp(union + eps)

    ew = jnp.maximum(jnp.maximum(b1_max_x, b2_max_x) - jnp.minimum(b1_min_x, b2_min_x), 0.0)
    eh = jnp.maximum(jnp.maximum(b1_max_y, b2_max_y) - jnp.minimum(b1_min_y, b2_min_y), 0.0)
    enclose = ew * eh
    giou = iou - (enclose - union) * _rcp(enclose + eps)

    # ---- per-(sublane, lane) partial sums for this step ----
    loc_p = jnp.where(mask, 1.0 - giou, 0.0)

    # class BCE streamed one channel at a time (no (C,S,128) materialization)
    ls = float(label_smoothing)
    cls_p = jnp.zeros((s_rows, LANES), jnp.float32)
    for k in range(num_classes):
        zc = pred_ref[0, 5 + k].astype(jnp.float32)
        tc = ytrue_ref[0, 5 + k].astype(jnp.float32)
        if ls != 0.0:                                    # compiled out when ls == 0
            tc = tc * (1.0 - ls) + (ls / num_classes)
        cls_p = cls_p + _bce_logits(zc, tc)
    cls_p = jnp.where(mask, cls_p, 0.0)

    tobj = jnp.where(mask, jnp.maximum(giou, 0.0), 0.0)
    conf_p = _bce_logits(z_conf, tobj)
    if padded:
        conf_p = jnp.where(valid, conf_p, 0.0)

    acc_ref[0, 0, :, :] += loc_p
    acc_ref[0, 1, :, :] += cls_p
    acc_ref[0, 2, :, :] += conf_p
    acc_ref[0, 3, :, :] += mask.astype(jnp.float32)


# ------------------------------- wrapper -----------------------------------
def yolo_loss_forward(l, inp, y_true, *, anchors, num_classes, input_shape,
                      anchors_mask=((6, 7, 8), (3, 4, 5), (0, 1, 2)),
                      label_smoothing=0.0):
    bs, _, in_h, in_w = inp.shape
    A = len(anchors_mask[l])
    C = 5 + num_classes
    HW = in_h * in_w
    stride_h = input_shape[0] / in_h
    stride_w = input_shape[1] / in_w
    scaled_anchors = (np.asarray(anchors, np.float32)
                      / np.array([stride_w, stride_h], np.float32))
    sa_l = scaled_anchors[list(anchors_mask[l])]                    # (A, 2)
    anchor_wh = tuple((float(sa_l[k, 0]), float(sa_l[k, 1])) for k in range(A))

    # ---- spatial tiling: pad to 128 lanes, pick sublane rows per step ----
    HWB = pl.cdiv(HW, LANES)               # 128-cell rows in the feature map
    # rows so that 2 inputs x 2 pipeline buffers stay within ~12 MiB (v7x-safe)
    budget_rows = max(8, (((12 << 20) // (2 * 2 * C * LANES * 4)) // 8) * 8)
    s_cap = min(64, budget_rows)           # 64: vreg-pressure sanity cap
    if HWB <= s_cap:
        S = HWB                            # whole map per step (full-dim block OK)
    else:
        S = s_cap                          # multiple of 8
    HWB_pad = pl.cdiv(HWB, S) * S
    n_hw_blocks = HWB_pad // S
    HW_pad = HWB_pad * LANES

    # pred: pure reshape of the native NCHW conv output (no transpose, no copy).
    pred = inp.reshape(bs * A, C, HW)
    # y_true arrives channels-last (like the permuted prediction): one permute.
    # TODO(synk): produce y_true channel-first upstream to avoid this HBM copy.
    yt = jnp.transpose(y_true.reshape(bs * A, HW, C), (0, 2, 1))
    if HW_pad != HW:
        pred = jnp.pad(pred, ((0, 0), (0, 0), (0, HW_pad - HW)))
        yt = jnp.pad(yt, ((0, 0), (0, 0), (0, HW_pad - HW)))
    pred = pred.reshape(bs * A, C, HWB_pad, LANES)
    yt = yt.reshape(bs * A, C, HWB_pad, LANES)

    kern = functools.partial(
        _yolo_loss_kernel, num_classes=num_classes, num_anchors=A,
        label_smoothing=float(label_smoothing), anchor_wh=anchor_wh,
        in_w=in_w, hw_count=HW, s_rows=S, padded=(HW_pad != HW))

    # explicit VMEM limit: covers the double-buffered input blocks + resident
    # accumulator with 2x headroom; >= 32 MiB so v5e's 16 MiB default never bites.
    in_block_bytes = C * S * LANES * (pred.dtype.itemsize + yt.dtype.itemsize)
    acc_block_bytes = 4 * S * LANES * 4
    vmem_limit = int(min(max(2 * (2 * in_block_bytes + 2 * acc_block_bytes),
                             32 << 20), 100 << 20))

    acc = pl.pallas_call(
        kern,
        out_shape=jax.ShapeDtypeStruct((bs * A, 4, S, LANES), jnp.float32),
        grid_spec=pltpu.PrefetchScalarGridSpec(
            num_scalar_prefetch=0,
            grid=(bs * A, n_hw_blocks),
            in_specs=[
                pl.BlockSpec((1, C, S, LANES), lambda ba, j: (ba, 0, j, 0)),
                pl.BlockSpec((1, C, S, LANES), lambda ba, j: (ba, 0, j, 0)),
            ],
            out_specs=pl.BlockSpec((1, 4, S, LANES),
                                   lambda ba, j: (ba, 0, 0, 0)),
        ),
        compiler_params=pltpu.CompilerParams(
            dimension_semantics=("parallel", "arbitrary"),
            vmem_limit_bytes=vmem_limit),
    )(pred, yt)

    sums = jnp.sum(acc, axis=(0, 2, 3))            # (4,) tiny epilogue reduce
    s_loc, s_cls, s_conf, n_pos = sums[0], sums[1], sums[2], sums[3]

    box_ratio = 0.05
    obj_ratio = 1.0 * (input_shape[0] * input_shape[1]) / 640.0 ** 2
    cls_ratio = 0.5 * (num_classes / 80.0)
    balance = [0.4, 1.0, 4]

    has_pos = n_pos > 0
    loss_loc = jnp.where(has_pos, s_loc / jnp.maximum(n_pos, 1.0), 0.0) * box_ratio
    loss_cls = jnp.where(has_pos,
                         s_cls / jnp.maximum(n_pos * num_classes, 1.0), 0.0) * cls_ratio
    loss_conf = (s_conf / (bs * A * HW)) * balance[l] * obj_ratio
    loss = loss_loc + loss_cls + loss_conf
    return loss, jnp.stack([loss_loc, loss_cls, loss_conf])


# --------------------------- pure-JAX reference -----------------------------
def yolo_loss_ref(l, inp, y_true, *, anchors, num_classes, input_shape,
                  anchors_mask=((6, 7, 8), (3, 4, 5), (0, 1, 2)),
                  label_smoothing=0.0):
    bs, _, in_h, in_w = inp.shape
    A = len(anchors_mask[l])
    C = 5 + num_classes
    stride_h = input_shape[0] / in_h
    stride_w = input_shape[1] / in_w
    scaled = np.asarray(anchors, np.float32) / np.array([stride_w, stride_h], np.float32)
    pred = jnp.transpose(inp.reshape(bs, A, C, in_h, in_w), (0, 1, 3, 4, 2))
    sig = jax.nn.sigmoid(pred.astype(jnp.float32))
    x, y, w, h, conf = sig[..., 0], sig[..., 1], sig[..., 2], sig[..., 3], sig[..., 4]
    pcls = sig[..., 5:]
    gx = jnp.arange(in_w, dtype=jnp.float32)[None, None, None, :]
    gy = jnp.arange(in_h, dtype=jnp.float32)[None, None, :, None]
    sa = scaled[list(anchors_mask[l])]
    aw = jnp.asarray(sa[:, 0])[None, :, None, None]
    ah = jnp.asarray(sa[:, 1])[None, :, None, None]
    pbx = x * 2 - 0.5 + gx
    pby = y * 2 - 0.5 + gy
    pbw = (w * 2) ** 2 * aw
    pbh = (h * 2) ** 2 * ah
    yt = y_true.astype(jnp.float32)
    obj = yt[..., 4]
    mask = obj == 1.0
    b2xy = yt[..., :2]
    b2wh = yt[..., 2:4]
    b1min = jnp.stack([pbx - pbw / 2, pby - pbh / 2], -1)
    b1max = jnp.stack([pbx + pbw / 2, pby + pbh / 2], -1)
    b2min = b2xy - b2wh / 2
    b2max = b2xy + b2wh / 2
    iwh = jnp.maximum(jnp.minimum(b1max, b2max) - jnp.maximum(b1min, b2min), 0.0)
    inter = iwh[..., 0] * iwh[..., 1]
    union = pbw * pbh + b2wh[..., 0] * b2wh[..., 1] - inter
    iou = inter / union
    ewh = jnp.maximum(jnp.maximum(b1max, b2max) - jnp.minimum(b1min, b2min), 0.0)
    enclose = ewh[..., 0] * ewh[..., 1]
    giou = iou - (enclose - union) / enclose
    eps = 1e-7

    def bce(p, t):
        p = jnp.clip(p, eps, 1 - eps)
        return -t * jnp.log(p) - (1 - t) * jnp.log(1 - p)

    sm = yt[..., 5:] * (1 - label_smoothing) + label_smoothing / num_classes
    n = jnp.sum(mask)
    nf = n.astype(jnp.float32)
    s_loc = jnp.sum(jnp.where(mask, 1 - giou, 0.0))
    s_cls = jnp.sum(jnp.where(mask[..., None], bce(pcls, sm), 0.0))
    tobj = jnp.where(mask, jnp.maximum(giou, 0.0), 0.0)
    s_conf = jnp.sum(bce(conf, tobj))
    box_ratio = 0.05
    obj_ratio = input_shape[0] * input_shape[1] / 640.0 ** 2
    cls_ratio = 0.5 * num_classes / 80.0
    balance = [0.4, 1.0, 4]
    loss_loc = jnp.where(n > 0, s_loc / jnp.maximum(nf, 1.0), 0.0) * box_ratio
    loss_cls = jnp.where(n > 0, s_cls / jnp.maximum(nf * num_classes, 1.0), 0.0) * cls_ratio
    loss_conf = s_conf / (bs * A * in_h * in_w) * balance[l] * obj_ratio
    return loss_loc + loss_cls + loss_conf, jnp.stack([loss_loc, loss_cls, loss_conf])


# ---------------------------------- main ------------------------------------
if __name__ == "__main__":
    bs, num_classes, H, W = 2, 8, 16, 16
    A = 3
    C = 5 + num_classes
    l = 0
    input_shape = (128, 128)
    anchors = np.array([[10, 13], [16, 30], [33, 23], [30, 61], [62, 45],
                        [59, 119], [116, 90], [156, 198], [373, 326]], np.float32)

    key = jax.random.PRNGKey(0)
    k1, k2, k3, k4 = jax.random.split(key, 4)
    inp = jax.random.normal(k1, (bs, A * C, H, W), dtype=jnp.float32)

    # deterministic synthetic y_true: sparse positives with valid boxes + one-hot cls
    pos = (jax.random.uniform(k2, (bs, A, H, W)) < 0.05).astype(jnp.float32)
    boxes = jax.random.uniform(k3, (bs, A, H, W, 4), minval=0.5, maxval=float(H) - 0.5)
    cls_idx = jax.random.randint(k4, (bs, A, H, W), 0, num_classes)
    cls_oh = jax.nn.one_hot(cls_idx, num_classes, dtype=jnp.float32)
    y_true = jnp.concatenate([boxes * pos[..., None], pos[..., None],
                              cls_oh * pos[..., None]], axis=-1)

    loss, losses = yolo_loss_forward(l, inp, y_true, anchors=anchors,
                                     num_classes=num_classes,
                                     input_shape=input_shape)
    jax.block_until_ready((loss, losses))

    loss_r, losses_r = yolo_loss_ref(l, inp, y_true, anchors=anchors,
                                     num_classes=num_classes,
                                     input_shape=input_shape)
    np.testing.assert_allclose(np.asarray(loss), np.asarray(loss_r), rtol=2e-3, atol=1e-5)
    np.testing.assert_allclose(np.asarray(losses), np.asarray(losses_r), rtol=2e-3, atol=1e-5)

    print("KERNEL_OK")
</pallas_src>

<mosaic_0001>
module attributes {stable_mosaic.version = 11 : i64} {
  func.func @_yolo_loss_kernel(%arg0: i32, %arg1: i32, %arg2: memref<1x13x2x128xf32, #tpu.memory_space<vmem>>, %arg3: memref<1x13x2x128xf32, #tpu.memory_space<vmem>>, %arg4: memref<1x4x2x128xf32, #tpu.memory_space<vmem>>) attributes {dimension_semantics = [#tpu.dimension_semantics<parallel>, #tpu.dimension_semantics<arbitrary>], iteration_bounds = array<i64: 6, 1>, scalar_prefetch = 0 : i64, scratch_operands = 0 : i64, tpu.core_type = #tpu.core_type<tc>, window_params = [{transform_indices = @transform_0, window_bounds = array<i64: 1, 13, 2, 128>}, {transform_indices = @transform_1, window_bounds = array<i64: 1, 13, 2, 128>}, {transform_indices = @transform_2, window_bounds = array<i64: 1, 4, 2, 128>}]} {
    %c3_i32 = arith.constant 3 : i32
    %c0_i32 = arith.constant 0 : i32
    %0 = arith.cmpi eq, %c3_i32, %c0_i32 : i32
    %c1_i32 = arith.constant 1 : i32
    %1 = arith.select %0, %c1_i32, %c3_i32 : i32
    %2 = arith.remsi %arg0, %1 : i32
    %c0_i32_0 = arith.constant 0 : i32
    %3 = arith.cmpi ne, %2, %c0_i32_0 : i32
    %c0_i32_1 = arith.constant 0 : i32
    %4 = arith.cmpi slt, %2, %c0_i32_1 : i32
    %c0_i32_2 = arith.constant 0 : i32
    %5 = arith.cmpi slt, %1, %c0_i32_2 : i32
    %6 = arith.xori %4, %5 : i1
    %7 = arith.andi %6, %3 : i1
    %8 = arith.addi %2, %1 : i32
    %9 = arith.select %7, %8, %2 : i32
    %c0_i32_3 = arith.constant 0 : i32
    %10 = arith.cmpi eq, %arg1, %c0_i32_3 : i32
    %11 = arith.extui %10 : i1 to i32
    %c0_i32_4 = arith.constant 0 : i32
    %12 = arith.cmpi ne, %11, %c0_i32_4 : i32
    scf.if %12 {
      %cst_208 = arith.constant 0.000000e+00 : f32
      %361 = vector.broadcast %cst_208 : f32 to vector<1x4x2x128xf32>
      %c0_209 = arith.constant 0 : index
      %c0_210 = arith.constant 0 : index
      %c0_211 = arith.constant 0 : index
      %c0_212 = arith.constant 0 : index
      %362 = vector.load %arg4[%c0_209, %c0_210, %c0_211, %c0_212] : memref<1x4x2x128xf32, #tpu.memory_space<vmem>>, vector<1x4x2x128xf32>
      tpu.vector_store %arg4[%c0_209, %c0_210, %c0_211, %c0_212], %361 {strides = array<i32>} : memref<1x4x2x128xf32, #tpu.memory_space<vmem>>, vector<1x4x2x128xf32>,
    } else {
    }
    %c1_i32_5 = arith.constant 1 : i32
    %13 = arith.cmpi eq, %9, %c1_i32_5 : i32
    %cst = arith.constant 1.950000e+01 : f32
    %cst_6 = arith.constant 1.450000e+01 : f32
    %14 = arith.select %13, %cst, %cst_6 : f32
    %c1_i32_7 = arith.constant 1 : i32
    %15 = arith.cmpi eq, %9, %c1_i32_7 : i32
    %cst_8 = arith.constant 2.475000e+01 : f32
    %cst_9 = arith.constant 1.125000e+01 : f32
    %16 = arith.select %15, %cst_8, %cst_9 : f32
    %c2_i32 = arith.constant 2 : i32
    %17 = arith.cmpi eq, %9, %c2_i32 : i32
    %cst_10 = arith.constant 4.662500e+01 : f32
    %18 = arith.select %17, %cst_10, %14 : f32
    %c2_i32_11 = arith.constant 2 : i32
    %19 = arith.cmpi eq, %9, %c2_i32_11 : i32
    %cst_12 = arith.constant 4.075000e+01 : f32
    %20 = arith.select %19, %cst_12, %16 : f32
    %21 = tpu.iota {dimensions = array<i32: 0>} : vector<2x128xi32>
    %22 = tpu.iota {dimensions = array<i32: 1>} : vector<2x128xi32>
    %c2_i32_13 = arith.constant 2 : i32
    %23 = arith.muli %arg1, %c2_i32_13 : i32
    %24 = vector.broadcast %23 : i32 to vector<2x128xi32>
    %25 = arith.addi %24, %21 : vector<2x128xi32>
    %c128_i32 = arith.constant 128 : i32
    %26 = vector.broadcast %c128_i32 : i32 to vector<2x128xi32>
    %27 = arith.muli %25, %26 : vector<2x128xi32>
    %28 = arith.addi %27, %22 : vector<2x128xi32>
    %29 = arith.sitofp %28 : vector<2x128xi32> to vector<2x128xf32>
    %cst_14 = arith.constant 5.000000e-01 : f32
    %30 = vector.broadcast %cst_14 : f32 to vector<2x128xf32>
    %31 = arith.addf %29, %30 : vector<2x128xf32>
    %cst_15 = arith.constant 6.250000e-02 : f32
    %32 = vector.broadcast %cst_15 : f32 to vector<2x128xf32>
    %33 = arith.mulf %31, %32 : vector<2x128xf32>
    %34 = math.floor %33 : vector<2x128xf32>
    %cst_16 = arith.constant 1.600000e+01 : f32
    %35 = vector.broadcast %cst_16 : f32 to vector<2x128xf32>
    %36 = arith.mulf %34, %35 : vector<2x128xf32>
    %37 = arith.subf %29, %36 : vector<2x128xf32>
    %c0 = arith.constant 0 : index
    %c0_17 = arith.constant 0 : index
    %c0_18 = arith.constant 0 : index
    %c0_19 = arith.constant 0 : index
    %38 = vector.load %arg2[%c0, %c0_17, %c0_18, %c0_19] : memref<1x13x2x128xf32, #tpu.memory_space<vmem>>, vector<1x1x2x128xf32>
    %39 = vector.shape_cast %38 : vector<1x1x2x128xf32> to vector<2x128xf32>
    %cst_20 = arith.constant 5.000000e-01 : f32
    %40 = vector.broadcast %cst_20 : f32 to vector<2x128xf32>
    %41 = arith.mulf %40, %39 : vector<2x128xf32>
    %42 = math.tanh %41 : vector<2x128xf32>
    %cst_21 = arith.constant 5.000000e-01 : f32
    %43 = vector.broadcast %cst_21 : f32 to vector<2x128xf32>
    %44 = arith.mulf %43, %42 : vector<2x128xf32>
    %cst_22 = arith.constant 5.000000e-01 : f32
    %45 = vector.broadcast %cst_22 : f32 to vector<2x128xf32>
    %46 = arith.addf %44, %45 : vector<2x128xf32>
    %c0_23 = arith.constant 0 : index
    %c1 = arith.constant 1 : index
    %c0_24 = arith.constant 0 : index
    %c0_25 = arith.constant 0 : index
    %47 = vector.load %arg2[%c0_23, %c1, %c0_24, %c0_25] : memref<1x13x2x128xf32, #tpu.memory_space<vmem>>, vector<1x1x2x128xf32>
    %48 = vector.shape_cast %47 : vector<1x1x2x128xf32> to vector<2x128xf32>
    %cst_26 = arith.constant 5.000000e-01 : f32
    %49 = vector.broadcast %cst_26 : f32 to vector<2x128xf32>
    %50 = arith.mulf %49, %48 : vector<2x128xf32>
    %51 = math.tanh %50 : vector<2x128xf32>
    %cst_27 = arith.constant 5.000000e-01 : f32
    %52 = vector.broadcast %cst_27 : f32 to vector<2x128xf32>
    %53 = arith.mulf %52, %51 : vector<2x128xf32>
    %cst_28 = arith.constant 5.000000e-01 : f32
    %54 = vector.broadcast %cst_28 : f32 to vector<2x128xf32>
    %55 = arith.addf %53, %54 : vector<2x128xf32>
    %c0_29 = arith.constant 0 : index
    %c2 = arith.constant 2 : index
    %c0_30 = arith.constant 0 : index
    %c0_31 = arith.constant 0 : index
    %56 = vector.load %arg2[%c0_29, %c2, %c0_30, %c0_31] : memref<1x13x2x128xf32, #tpu.memory_space<vmem>>, vector<1x1x2x128xf32>
    %57 = vector.shape_cast %56 : vector<1x1x2x128xf32> to vector<2x128xf32>
    %cst_32 = arith.constant 5.000000e-01 : f32
    %58 = vector.broadcast %cst_32 : f32 to vector<2x128xf32>
    %59 = arith.mulf %58, %57 : vector<2x128xf32>
    %60 = math.tanh %59 : vector<2x128xf32>
    %cst_33 = arith.constant 5.000000e-01 : f32
    %61 = vector.broadcast %cst_33 : f32 to vector<2x128xf32>
    %62 = arith.mulf %61, %60 : vector<2x128xf32>
    %cst_34 = arith.constant 5.000000e-01 : f32
    %63 = vector.broadcast %cst_34 : f32 to vector<2x128xf32>
    %64 = arith.addf %62, %63 : vector<2x128xf32>
    %c0_35 = arith.constant 0 : index
    %c3 = arith.constant 3 : index
    %c0_36 = arith.constant 0 : index
    %c0_37 = arith.constant 0 : index
    %65 = vector.load %arg2[%c0_35, %c3, %c0_36, %c0_37] : memref<1x13x2x128xf32, #tpu.memory_space<vmem>>, vector<1x1x2x128xf32>
    %66 = vector.shape_cast %65 : vector<1x1x2x128xf32> to vector<2x128xf32>
    %cst_38 = arith.constant 5.000000e-01 : f32
    %67 = vector.broadcast %cst_38 : f32 to vector<2x128xf32>
    %68 = arith.mulf %67, %66 : vector<2x128xf32>
    %69 = math.tanh %68 : vector<2x128xf32>
    %cst_39 = arith.constant 5.000000e-01 : f32
    %70 = vector.broadcast %cst_39 : f32 to vector<2x128xf32>
    %71 = arith.mulf %70, %69 : vector<2x128xf32>
    %cst_40 = arith.constant 5.000000e-01 : f32
    %72 = vector.broadcast %cst_40 : f32 to vector<2x128xf32>
    %73 = arith.addf %71, %72 : vector<2x128xf32>
    %c0_41 = arith.constant 0 : index
    %c4 = arith.constant 4 : index
    %c0_42 = arith.constant 0 : index
    %c0_43 = arith.constant 0 : index
    %74 = vector.load %arg2[%c0_41, %c4, %c0_42, %c0_43] : memref<1x13x2x128xf32, #tpu.memory_space<vmem>>, vector<1x1x2x128xf32>
    %75 = vector.shape_cast %74 : vector<1x1x2x128xf32> to vector<2x128xf32>
    %c0_44 = arith.constant 0 : index
    %c0_45 = arith.constant 0 : index
    %c0_46 = arith.constant 0 : index
    %c0_47 = arith.constant 0 : index
    %76 = vector.load %arg3[%c0_44, %c0_45, %c0_46, %c0_47] : memref<1x13x2x128xf32, #tpu.memory_space<vmem>>, vector<1x1x2x128xf32>
    %77 = vector.shape_cast %76 : vector<1x1x2x128xf32> to vector<2x128xf32>
    %c0_48 = arith.constant 0 : index
    %c1_49 = arith.constant 1 : index
    %c0_50 = arith.constant 0 : index
    %c0_51 = arith.constant 0 : index
    %78 = vector.load %arg3[%c0_48, %c1_49, %c0_50, %c0_51] : memref<1x13x2x128xf32, #tpu.memory_space<vmem>>, vector<1x1x2x128xf32>
    %79 = vector.shape_cast %78 : vector<1x1x2x128xf32> to vector<2x128xf32>
    %c0_52 = arith.constant 0 : index
    %c2_53 = arith.constant 2 : index
    %c0_54 = arith.constant 0 : index
    %c0_55 = arith.constant 0 : index
    %80 = vector.load %arg3[%c0_52, %c2_53, %c0_54, %c0_55] : memref<1x13x2x128xf32, #tpu.memory_space<vmem>>, vector<1x1x2x128xf32>
    %81 = vector.shape_cast %80 : vector<1x1x2x128xf32> to vector<2x128xf32>
    %c0_56 = arith.constant 0 : index
    %c3_57 = arith.constant 3 : index
    %c0_58 = arith.constant 0 : index
    %c0_59 = arith.constant 0 : index
    %82 = vector.load %arg3[%c0_56, %c3_57, %c0_58, %c0_59] : memref<1x13x2x128xf32, #tpu.memory_space<vmem>>, vector<1x1x2x128xf32>
    %83 = vector.shape_cast %82 : vector<1x1x2x128xf32> to vector<2x128xf32>
    %c0_60 = arith.constant 0 : index
    %c4_61 = arith.constant 4 : index
    %c0_62 = arith.constant 0 : index
    %c0_63 = arith.constant 0 : index
    %84 = vector.load %arg3[%c0_60, %c4_61, %c0_62, %c0_63] : memref<1x13x2x128xf32, #tpu.memory_space<vmem>>, vector<1x1x2x128xf32>
    %85 = vector.shape_cast %84 : vector<1x1x2x128xf32> to vector<2x128xf32>
    %cst_64 = arith.constant 1.000000e+00 : f32
    %86 = vector.broadcast %cst_64 : f32 to vector<2x128xf32>
    %87 = arith.cmpf oeq, %85, %86 : vector<2x128xf32>
    %cst_65 = arith.constant 2.000000e+00 : f32
    %88 = vector.broadcast %cst_65 : f32 to vector<2x128xf32>
    %89 = arith.mulf %46, %88 : vector<2x128xf32>
    %cst_66 = arith.constant 5.000000e-01 : f32
    %90 = vector.broadcast %cst_66 : f32 to vector<2x128xf32>
    %91 = arith.subf %89, %90 : vector<2x128xf32>
    %92 = arith.addf %91, %37 : vector<2x128xf32>
    %cst_67 = arith.constant 2.000000e+00 : f32
    %93 = vector.broadcast %cst_67 : f32 to vector<2x128xf32>
    %94 = arith.mulf %55, %93 : vector<2x128xf32>
    %cst_68 = arith.constant 5.000000e-01 : f32
    %95 = vector.broadcast %cst_68 : f32 to vector<2x128xf32>
    %96 = arith.subf %94, %95 : vector<2x128xf32>
    %97 = arith.addf %96, %34 : vector<2x128xf32>
    %cst_69 = arith.constant 2.000000e+00 : f32
    %98 = vector.broadcast %cst_69 : f32 to vector<2x128xf32>
    %99 = arith.mulf %64, %98 : vector<2x128xf32>
    %100 = arith.mulf %99, %99 : vector<2x128xf32>
    %101 = vector.broadcast %18 : f32 to vector<2x128xf32>
    %102 = arith.mulf %100, %101 : vector<2x128xf32>
    %cst_70 = arith.constant 2.000000e+00 : f32
    %103 = vector.broadcast %cst_70 : f32 to vector<2x128xf32>
    %104 = arith.mulf %73, %103 : vector<2x128xf32>
    %105 = arith.mulf %104, %104 : vector<2x128xf32>
    %106 = vector.broadcast %20 : f32 to vector<2x128xf32>
    %107 = arith.mulf %105, %106 : vector<2x128xf32>
    %cst_71 = arith.constant 5.000000e-01 : f32
    %108 = vector.broadcast %cst_71 : f32 to vector<2x128xf32>
    %109 = arith.mulf %102, %108 : vector<2x128xf32>
    %110 = arith.subf %92, %109 : vector<2x128xf32>
    %cst_72 = arith.constant 5.000000e-01 : f32
    %111 = vector.broadcast %cst_72 : f32 to vector<2x128xf32>
    %112 = arith.mulf %102, %111 : vector<2x128xf32>
    %113 = arith.addf %92, %112 : vector<2x128xf32>
    %cst_73 = arith.constant 5.000000e-01 : f32
    %114 = vector.broadcast %cst_73 : f32 to vector<2x128xf32>
    %115 = arith.mulf %107, %114 : vector<2x128xf32>
    %116 = arith.subf %97, %115 : vector<2x128xf32>
    %cst_74 = arith.constant 5.000000e-01 : f32
    %117 = vector.broadcast %cst_74 : f32 to vector<2x128xf32>
    %118 = arith.mulf %107, %117 : vector<2x128xf32>
    %119 = arith.addf %97, %118 : vector<2x128xf32>
    %cst_75 = arith.constant 5.000000e-01 : f32
    %120 = vector.broadcast %cst_75 : f32 to vector<2x128xf32>
    %121 = arith.mulf %81, %120 : vector<2x128xf32>
    %122 = arith.subf %77, %121 : vector<2x128xf32>
    %cst_76 = arith.constant 5.000000e-01 : f32
    %123 = vector.broadcast %cst_76 : f32 to vector<2x128xf32>
    %124 = arith.mulf %81, %123 : vector<2x128xf32>
    %125 = arith.addf %77, %124 : vector<2x128xf32>
    %cst_77 = arith.constant 5.000000e-01 : f32
    %126 = vector.broadcast %cst_77 : f32 to vector<2x128xf32>
    %127 = arith.mulf %83, %126 : vector<2x128xf32>
    %128 = arith.subf %79, %127 : vector<2x128xf32>
    %cst_78 = arith.constant 5.000000e-01 : f32
    %129 = vector.broadcast %cst_78 : f32 to vector<2x128xf32>
    %130 = arith.mulf %83, %129 : vector<2x128xf32>
    %131 = arith.addf %79, %130 : vector<2x128xf32>
    %132 = arith.minimumf %113, %125 : vector<2x128xf32>
    %133 = arith.maximumf %110, %122 : vector<2x128xf32>
    %134 = arith.subf %132, %133 : vector<2x128xf32>
    %cst_79 = arith.constant 0.000000e+00 : f32
    %135 = vector.broadcast %cst_79 : f32 to vector<2x128xf32>
    %136 = arith.maximumf %134, %135 : vector<2x128xf32>
    %137 = arith.minimumf %119, %131 : vector<2x128xf32>
    %138 = arith.maximumf %116, %128 : vector<2x128xf32>
    %139 = arith.subf %137, %138 : vector<2x128xf32>
    %cst_80 = arith.constant 0.000000e+00 : f32
    %140 = vector.broadcast %cst_80 : f32 to vector<2x128xf32>
    %141 = arith.maximumf %139, %140 : vector<2x128xf32>
    %142 = arith.mulf %136, %141 : vector<2x128xf32>
    %143 = arith.mulf %102, %107 : vector<2x128xf32>
    %144 = arith.mulf %81, %83 : vector<2x128xf32>
    %145 = arith.addf %143, %144 : vector<2x128xf32>
    %146 = arith.subf %145, %142 : vector<2x128xf32>
    %cst_81 = arith.constant 1.000000e-07 : f32
    %147 = vector.broadcast %cst_81 : f32 to vector<2x128xf32>
    %148 = arith.addf %146, %147 : vector<2x128xf32>
    %149 = tpu.reciprocal %148 {approx = true} : vector<2x128xf32> -> vector<2x128xf32>
    %150 = arith.mulf %148, %149 : vector<2x128xf32>
    %cst_82 = arith.constant 2.000000e+00 : f32
    %151 = vector.broadcast %cst_82 : f32 to vector<2x128xf32>
    %152 = arith.subf %151, %150 : vector<2x128xf32>
    %153 = arith.mulf %149, %152 : vector<2x128xf32>
    %154 = arith.mulf %142, %153 : vector<2x128xf32>
    %155 = arith.maximumf %113, %125 : vector<2x128xf32>
    %156 = arith.minimumf %110, %122 : vector<2x128xf32>
    %157 = arith.subf %155, %156 : vector<2x128xf32>
    %cst_83 = arith.constant 0.000000e+00 : f32
    %158 = vector.broadcast %cst_83 : f32 to vector<2x128xf32>
    %159 = arith.maximumf %157, %158 : vector<2x128xf32>
    %160 = arith.maximumf %119, %131 : vector<2x128xf32>
    %161 = arith.minimumf %116, %128 : vector<2x128xf32>
    %162 = arith.subf %160, %161 : vector<2x128xf32>
    %cst_84 = arith.constant 0.000000e+00 : f32
    %163 = vector.broadcast %cst_84 : f32 to vector<2x128xf32>
    %164 = arith.maximumf %162, %163 : vector<2x128xf32>
    %165 = arith.mulf %159, %164 : vector<2x128xf32>
    %166 = arith.subf %165, %146 : vector<2x128xf32>
    %cst_85 = arith.constant 1.000000e-07 : f32
    %167 = vector.broadcast %cst_85 : f32 to vector<2x128xf32>
    %168 = arith.addf %165, %167 : vector<2x128xf32>
    %169 = tpu.reciprocal %168 {approx = true} : vector<2x128xf32> -> vector<2x128xf32>
    %170 = arith.mulf %168, %169 : vector<2x128xf32>
    %cst_86 = arith.constant 2.000000e+00 : f32
    %171 = vector.broadcast %cst_86 : f32 to vector<2x128xf32>
    %172 = arith.subf %171, %170 : vector<2x128xf32>
    %173 = arith.mulf %169, %172 : vector<2x128xf32>
    %174 = arith.mulf %166, %173 : vector<2x128xf32>
    %175 = arith.subf %154, %174 : vector<2x128xf32>
    %cst_87 = arith.constant 1.000000e+00 : f32
    %176 = vector.broadcast %cst_87 : f32 to vector<2x128xf32>
    %177 = arith.subf %176, %175 : vector<2x128xf32>
    %cst_88 = arith.constant 0.000000e+00 : f32
    %178 = vector.broadcast %cst_88 : f32 to vector<2x128xf32>
    %179 = arith.select %87, %177, %178 : vector<2x128xi1>, vector<2x128xf32>
    %cst_89 = arith.constant 0.000000e+00 : f32
    %180 = vector.broadcast %cst_89 : f32 to vector<2x128xf32>
    %c0_90 = arith.constant 0 : index
    %c5 = arith.constant 5 : index
    %c0_91 = arith.constant 0 : index
    %c0_92 = arith.constant 0 : index
    %181 = vector.load %arg2[%c0_90, %c5, %c0_91, %c0_92] : memref<1x13x2x128xf32, #tpu.memory_space<vmem>>, vector<1x1x2x128xf32>
    %182 = vector.shape_cast %181 : vector<1x1x2x128xf32> to vector<2x128xf32>
    %c0_93 = arith.constant 0 : index
    %c5_94 = arith.constant 5 : index
    %c0_95 = arith.constant 0 : index
    %c0_96 = arith.constant 0 : index
    %183 = vector.load %arg3[%c0_93, %c5_94, %c0_95, %c0_96] : memref<1x13x2x128xf32, #tpu.memory_space<vmem>>, vector<1x1x2x128xf32>
    %184 = vector.shape_cast %183 : vector<1x1x2x128xf32> to vector<2x128xf32>
    %cst_97 = arith.constant 0.000000e+00 : f32
    %185 = vector.broadcast %cst_97 : f32 to vector<2x128xf32>
    %186 = arith.maximumf %182, %185 : vector<2x128xf32>
    %187 = arith.mulf %182, %184 : vector<2x128xf32>
    %188 = arith.subf %186, %187 : vector<2x128xf32>
    %189 = math.absf %182 : vector<2x128xf32>
    %cst_98 = arith.constant 0.000000e+00 : f32
    %190 = vector.broadcast %cst_98 : f32 to vector<2x128xf32>
    %191 = arith.subf %190, %189 : vector<2x128xf32>
    %192 = math.exp %191 : vector<2x128xf32>
    %cst_99 = arith.constant 1.000000e+00 : f32
    %193 = vector.broadcast %cst_99 : f32 to vector<2x128xf32>
    %194 = arith.addf %193, %192 : vector<2x128xf32>
    %195 = math.log %194 : vector<2x128xf32>
    %196 = arith.addf %188, %195 : vector<2x128xf32>
    %197 = arith.addf %180, %196 : vector<2x128xf32>
    %c0_100 = arith.constant 0 : index
    %c6 = arith.constant 6 : index
    %c0_101 = arith.constant 0 : index
    %c0_102 = arith.constant 0 : index
    %198 = vector.load %arg2[%c0_100, %c6, %c0_101, %c0_102] : memref<1x13x2x128xf32, #tpu.memory_space<vmem>>, vector<1x1x2x128xf32>
    %199 = vector.shape_cast %198 : vector<1x1x2x128xf32> to vector<2x128xf32>
    %c0_103 = arith.constant 0 : index
    %c6_104 = arith.constant 6 : index
    %c0_105 = arith.constant 0 : index
    %c0_106 = arith.constant 0 : index
    %200 = vector.load %arg3[%c0_103, %c6_104, %c0_105, %c0_106] : memref<1x13x2x128xf32, #tpu.memory_space<vmem>>, vector<1x1x2x128xf32>
    %201 = vector.shape_cast %200 : vector<1x1x2x128xf32> to vector<2x128xf32>
    %cst_107 = arith.constant 0.000000e+00 : f32
    %202 = vector.broadcast %cst_107 : f32 to vector<2x128xf32>
    %203 = arith.maximumf %199, %202 : vector<2x128xf32>
    %204 = arith.mulf %199, %201 : vector<2x128xf32>
    %205 = arith.subf %203, %204 : vector<2x128xf32>
    %206 = math.absf %199 : vector<2x128xf32>
    %cst_108 = arith.constant 0.000000e+00 : f32
    %207 = vector.broadcast %cst_108 : f32 to vector<2x128xf32>
    %208 = arith.subf %207, %206 : vector<2x128xf32>
    %209 = math.exp %208 : vector<2x128xf32>
    %cst_109 = arith.constant 1.000000e+00 : f32
    %210 = vector.broadcast %cst_109 : f32 to vector<2x128xf32>
    %211 = arith.addf %210, %209 : vector<2x128xf32>
    %212 = math.log %211 : vector<2x128xf32>
    %213 = arith.addf %205, %212 : vector<2x128xf32>
    %214 = arith.addf %197, %213 : vector<2x128xf32>
    %c0_110 = arith.constant 0 : index
    %c7 = arith.constant 7 : index
    %c0_111 = arith.constant 0 : index
    %c0_112 = arith.constant 0 : index
    %215 = vector.load %arg2[%c0_110, %c7, %c0_111, %c0_112] : memref<1x13x2x128xf32, #tpu.memory_space<vmem>>, vector<1x1x2x128xf32>
    %216 = vector.shape_cast %215 : vector<1x1x2x128xf32> to vector<2x128xf32>
    %c0_113 = arith.constant 0 : index
    %c7_114 = arith.constant 7 : index
    %c0_115 = arith.constant 0 : index
    %c0_116 = arith.constant 0 : index
    %217 = vector.load %arg3[%c0_113, %c7_114, %c0_115, %c0_116] : memref<1x13x2x128xf32, #tpu.memory_space<vmem>>, vector<1x1x2x128xf32>
    %218 = vector.shape_cast %217 : vector<1x1x2x128xf32> to vector<2x128xf32>
    %cst_117 = arith.constant 0.000000e+00 : f32
    %219 = vector.broadcast %cst_117 : f32 to vector<2x128xf32>
    %220 = arith.maximumf %216, %219 : vector<2x128xf32>
    %221 = arith.mulf %216, %218 : vector<2x128xf32>
    %222 = arith.subf %220, %221 : vector<2x128xf32>
    %223 = math.absf %216 : vector<2x128xf32>
    %cst_118 = arith.constant 0.000000e+00 : f32
    %224 = vector.broadcast %cst_118 : f32 to vector<2x128xf32>
    %225 = arith.subf %224, %223 : vector<2x128xf32>
    %226 = math.exp %225 : vector<2x128xf32>
    %cst_119 = arith.constant 1.000000e+00 : f32
    %227 = vector.broadcast %cst_119 : f32 to vector<2x128xf32>
    %228 = arith.addf %227, %226 : vector<2x128xf32>
    %229 = math.log %228 : vector<2x128xf32>
    %230 = arith.addf %222, %229 : vector<2x128xf32>
    %231 = arith.addf %214, %230 : vector<2x128xf32>
    %c0_120 = arith.constant 0 : index
    %c8 = arith.constant 8 : index
    %c0_121 = arith.constant 0 : index
    %c0_122 = arith.constant 0 : index
    %232 = vector.load %arg2[%c0_120, %c8, %c0_121, %c0_122] : memref<1x13x2x128xf32, #tpu.memory_space<vmem>>, vector<1x1x2x128xf32>
    %233 = vector.shape_cast %232 : vector<1x1x2x128xf32> to vector<2x128xf32>
    %c0_123 = arith.constant 0 : index
    %c8_124 = arith.constant 8 : index
    %c0_125 = arith.constant 0 : index
    %c0_126 = arith.constant 0 : index
    %234 = vector.load %arg3[%c0_123, %c8_124, %c0_125, %c0_126] : memref<1x13x2x128xf32, #tpu.memory_space<vmem>>, vector<1x1x2x128xf32>
    %235 = vector.shape_cast %234 : vector<1x1x2x128xf32> to vector<2x128xf32>
    %cst_127 = arith.constant 0.000000e+00 : f32
    %236 = vector.broadcast %cst_127 : f32 to vector<2x128xf32>
    %237 = arith.maximumf %233, %236 : vector<2x128xf32>
    %238 = arith.mulf %233, %235 : vector<2x128xf32>
    %239 = arith.subf %237, %238 : vector<2x128xf32>
    %240 = math.absf %233 : vector<2x128xf32>
    %cst_128 = arith.constant 0.000000e+00 : f32
    %241 = vector.broadcast %cst_128 : f32 to vector<2x128xf32>
    %242 = arith.subf %241, %240 : vector<2x128xf32>
    %243 = math.exp %242 : vector<2x128xf32>
    %cst_129 = arith.constant 1.000000e+00 : f32
    %244 = vector.broadcast %cst_129 : f32 to vector<2x128xf32>
    %245 = arith.addf %244, %243 : vector<2x128xf32>
    %246 = math.log %245 : vector<2x128xf32>
    %247 = arith.addf %239, %246 : vector<2x128xf32>
    %248 = arith.addf %231, %247 : vector<2x128xf32>
    %c0_130 = arith.constant 0 : index
    %c9 = arith.constant 9 : index
    %c0_131 = arith.constant 0 : index
    %c0_132 = arith.constant 0 : index
    %249 = vector.load %arg2[%c0_130, %c9, %c0_131, %c0_132] : memref<1x13x2x128xf32, #tpu.memory_space<vmem>>, vector<1x1x2x128xf32>
    %250 = vector.shape_cast %249 : vector<1x1x2x128xf32> to vector<2x128xf32>
    %c0_133 = arith.constant 0 : index
    %c9_134 = arith.constant 9 : index
    %c0_135 = arith.constant 0 : index
    %c0_136 = arith.constant 0 : index
    %251 = vector.load %arg3[%c0_133, %c9_134, %c0_135, %c0_136] : memref<1x13x2x128xf32, #tpu.memory_space<vmem>>, vector<1x1x2x128xf32>
    %252 = vector.shape_cast %251 : vector<1x1x2x128xf32> to vector<2x128xf32>
    %cst_137 = arith.constant 0.000000e+00 : f32
    %253 = vector.broadcast %cst_137 : f32 to vector<2x128xf32>
    %254 = arith.maximumf %250, %253 : vector<2x128xf32>
    %255 = arith.mulf %250, %252 : vector<2x128xf32>
    %256 = arith.subf %254, %255 : vector<2x128xf32>
    %257 = math.absf %250 : vector<2x128xf32>
    %cst_138 = arith.constant 0.000000e+00 : f32
    %258 = vector.broadcast %cst_138 : f32 to vector<2x128xf32>
    %259 = arith.subf %258, %257 : vector<2x128xf32>
    %260 = math.exp %259 : vector<2x128xf32>
    %cst_139 = arith.constant 1.000000e+00 : f32
    %261 = vector.broadcast %cst_139 : f32 to vector<2x128xf32>
    %262 = arith.addf %261, %260 : vector<2x128xf32>
    %263 = math.log %262 : vector<2x128xf32>
    %264 = arith.addf %256, %263 : vector<2x128xf32>
    %265 = arith.addf %248, %264 : vector<2x128xf32>
    %c0_140 = arith.constant 0 : index
    %c10 = arith.constant 10 : index
    %c0_141 = arith.constant 0 : index
    %c0_142 = arith.constant 0 : index
    %266 = vector.load %arg2[%c0_140, %c10, %c0_141, %c0_142] : memref<1x13x2x128xf32, #tpu.memory_space<vmem>>, vector<1x1x2x128xf32>
    %267 = vector.shape_cast %266 : vector<1x1x2x128xf32> to vector<2x128xf32>
    %c0_143 = arith.constant 0 : index
    %c10_144 = arith.constant 10 : index
    %c0_145 = arith.constant 0 : index
    %c0_146 = arith.constant 0 : index
    %268 = vector.load %arg3[%c0_143, %c10_144, %c0_145, %c0_146] : memref<1x13x2x128xf32, #tpu.memory_space<vmem>>, vector<1x1x2x128xf32>
    %269 = vector.shape_cast %268 : vector<1x1x2x128xf32> to vector<2x128xf32>
    %cst_147 = arith.constant 0.000000e+00 : f32
    %270 = vector.broadcast %cst_147 : f32 to vector<2x128xf32>
    %271 = arith.maximumf %267, %270 : vector<2x128xf32>
    %272 = arith.mulf %267, %269 : vector<2x128xf32>
    %273 = arith.subf %271, %272 : vector<2x128xf32>
    %274 = math.absf %267 : vector<2x128xf32>
    %cst_148 = arith.constant 0.000000e+00 : f32
    %275 = vector.broadcast %cst_148 : f32 to vector<2x128xf32>
    %276 = arith.subf %275, %274 : vector<2x128xf32>
    %277 = math.exp %276 : vector<2x128xf32>
    %cst_149 = arith.constant 1.000000e+00 : f32
    %278 = vector.broadcast %cst_149 : f32 to vector<2x128xf32>
    %279 = arith.addf %278, %277 : vector<2x128xf32>
    %280 = math.log %279 : vector<2x128xf32>
    %281 = arith.addf %273, %280 : vector<2x128xf32>
    %282 = arith.addf %265, %281 : vector<2x128xf32>
    %c0_150 = arith.constant 0 : index
    %c11 = arith.constant 11 : index
    %c0_151 = arith.constant 0 : index
    %c0_152 = arith.constant 0 : index
    %283 = vector.load %arg2[%c0_150, %c11, %c0_151, %c0_152] : memref<1x13x2x128xf32, #tpu.memory_space<vmem>>, vector<1x1x2x128xf32>
    %284 = vector.shape_cast %283 : vector<1x1x2x128xf32> to vector<2x128xf32>
    %c0_153 = arith.constant 0 : index
    %c11_154 = arith.constant 11 : index
    %c0_155 = arith.constant 0 : index
    %c0_156 = arith.constant 0 : index
    %285 = vector.load %arg3[%c0_153, %c11_154, %c0_155, %c0_156] : memref<1x13x2x128xf32, #tpu.memory_space<vmem>>, vector<1x1x2x128xf32>
    %286 = vector.shape_cast %285 : vector<1x1x2x128xf32> to vector<2x128xf32>
    %cst_157 = arith.constant 0.000000e+00 : f32
    %287 = vector.broadcast %cst_157 : f32 to vector<2x128xf32>
    %288 = arith.maximumf %284, %287 : vector<2x128xf32>
    %289 = arith.mulf %284, %286 : vector<2x128xf32>
    %290 = arith.subf %288, %289 : vector<2x128xf32>
    %291 = math.absf %284 : vector<2x128xf32>
    %cst_158 = arith.constant 0.000000e+00 : f32
    %292 = vector.broadcast %cst_158 : f32 to vector<2x128xf32>
    %293 = arith.subf %292, %291 : vector<2x128xf32>
    %294 = math.exp %293 : vector<2x128xf32>
    %cst_159 = arith.constant 1.000000e+00 : f32
    %295 = vector.broadcast %cst_159 : f32 to vector<2x128xf32>
    %296 = arith.addf %295, %294 : vector<2x128xf32>
    %297 = math.log %296 : vector<2x128xf32>
    %298 = arith.addf %290, %297 : vector<2x128xf32>
    %299 = arith.addf %282, %298 : vector<2x128xf32>
    %c0_160 = arith.constant 0 : index
    %c12 = arith.constant 12 : index
    %c0_161 = arith.constant 0 : index
    %c0_162 = arith.constant 0 : index
    %300 = vector.load %arg2[%c0_160, %c12, %c0_161, %c0_162] : memref<1x13x2x128xf32, #tpu.memory_space<vmem>>, vector<1x1x2x128xf32>
    %301 = vector.shape_cast %300 : vector<1x1x2x128xf32> to vector<2x128xf32>
    %c0_163 = arith.constant 0 : index
    %c12_164 = arith.constant 12 : index
    %c0_165 = arith.constant 0 : index
    %c0_166 = arith.constant 0 : index
    %302 = vector.load %arg3[%c0_163, %c12_164, %c0_165, %c0_166] : memref<1x13x2x128xf32, #tpu.memory_space<vmem>>, vector<1x1x2x128xf32>
    %303 = vector.shape_cast %302 : vector<1x1x2x128xf32> to vector<2x128xf32>
    %cst_167 = arith.constant 0.000000e+00 : f32
    %304 = vector.broadcast %cst_167 : f32 to vector<2x128xf32>
    %305 = arith.maximumf %301, %304 : vector<2x128xf32>
    %306 = arith.mulf %301, %303 : vector<2x128xf32>
    %307 = arith.subf %305, %306 : vector<2x128xf32>
    %308 = math.absf %301 : vector<2x128xf32>
    %cst_168 = arith.constant 0.000000e+00 : f32
    %309 = vector.broadcast %cst_168 : f32 to vector<2x128xf32>
    %310 = arith.subf %309, %308 : vector<2x128xf32>
    %311 = math.exp %310 : vector<2x128xf32>
    %cst_169 = arith.constant 1.000000e+00 : f32
    %312 = vector.broadcast %cst_169 : f32 to vector<2x128xf32>
    %313 = arith.addf %312, %311 : vector<2x128xf32>
    %314 = math.log %313 : vector<2x128xf32>
    %315 = arith.addf %307, %314 : vector<2x128xf32>
    %316 = arith.addf %299, %315 : vector<2x128xf32>
    %cst_170 = arith.constant 0.000000e+00 : f32
    %317 = vector.broadcast %cst_170 : f32 to vector<2x128xf32>
    %318 = arith.select %87, %316, %317 : vector<2x128xi1>, vector<2x128xf32>
    %cst_171 = arith.constant 0.000000e+00 : f32
    %319 = vector.broadcast %cst_171 : f32 to vector<2x128xf32>
    %320 = arith.maximumf %175, %319 : vector<2x128xf32>
    %cst_172 = arith.constant 0.000000e+00 : f32
    %321 = vector.broadcast %cst_172 : f32 to vector<2x128xf32>
    %322 = arith.select %87, %320, %321 : vector<2x128xi1>, vector<2x128xf32>
    %cst_173 = arith.constant 0.000000e+00 : f32
    %323 = vector.broadcast %cst_173 : f32 to vector<2x128xf32>
    %324 = arith.maximumf %75, %323 : vector<2x128xf32>
    %325 = arith.mulf %75, %322 : vector<2x128xf32>
    %326 = arith.subf %324, %325 : vector<2x128xf32>
    %327 = math.absf %75 : vector<2x128xf32>
    %cst_174 = arith.constant 0.000000e+00 : f32
    %328 = vector.broadcast %cst_174 : f32 to vector<2x128xf32>
    %329 = arith.subf %328, %327 : vector<2x128xf32>
    %330 = math.exp %329 : vector<2x128xf32>
    %cst_175 = arith.constant 1.000000e+00 : f32
    %331 = vector.broadcast %cst_175 : f32 to vector<2x128xf32>
    %332 = arith.addf %331, %330 : vector<2x128xf32>
    %333 = math.log %332 : vector<2x128xf32>
    %334 = arith.addf %326, %333 : vector<2x128xf32>
    %c0_176 = arith.constant 0 : index
    %c0_177 = arith.constant 0 : index
    %c0_178 = arith.constant 0 : index
    %c0_179 = arith.constant 0 : index
    %335 = vector.load %arg4[%c0_176, %c0_177, %c0_178, %c0_179] : memref<1x4x2x128xf32, #tpu.memory_space<vmem>>, vector<1x1x2x128xf32>
    %336 = vector.shape_cast %335 : vector<1x1x2x128xf32> to vector<2x128xf32>
    %337 = arith.addf %336, %179 : vector<2x128xf32>
    %c0_180 = arith.constant 0 : index
    %c0_181 = arith.constant 0 : index
    %c0_182 = arith.constant 0 : index
    %c0_183 = arith.constant 0 : index
    %338 = vector.load %arg4[%c0_180, %c0_181, %c0_182, %c0_183] : memref<1x4x2x128xf32, #tpu.memory_space<vmem>>, vector<1x1x2x128xf32>
    %339 = vector.shape_cast %338 : vector<1x1x2x128xf32> to vector<2x128xf32>
    %340 = vector.shape_cast %337 : vector<2x128xf32> to vector<1x1x2x128xf32>
    tpu.vector_store %arg4[%c0_180, %c0_181, %c0_182, %c0_183], %340 {strides = array<i32>} : memref<1x4x2x128xf32, #tpu.memory_space<vmem>>, vector<1x1x2x128xf32>,
    %c0_184 = arith.constant 0 : index
    %c1_185 = arith.constant 1 : index
    %c0_186 = arith.constant 0 : index
    %c0_187 = arith.constant 0 : index
    %341 = vector.load %arg4[%c0_184, %c1_185, %c0_186, %c0_187] : memref<1x4x2x128xf32, #tpu.memory_space<vmem>>, vector<1x1x2x128xf32>
    %342 = vector.shape_cast %341 : vector<1x1x2x128xf32> to vector<2x128xf32>
    %343 = arith.addf %342, %318 : vector<2x128xf32>
    %c0_188 = arith.constant 0 : index
    %c1_189 = arith.constant 1 : index
    %c0_190 = arith.constant 0 : index
    %c0_191 = arith.constant 0 : index
    %344 = vector.load %arg4[%c0_188, %c1_189, %c0_190, %c0_191] : memref<1x4x2x128xf32, #tpu.memory_space<vmem>>, vector<1x1x2x128xf32>
    %345 = vector.shape_cast %344 : vector<1x1x2x128xf32> to vector<2x128xf32>
    %346 = vector.shape_cast %343 : vector<2x128xf32> to vector<1x1x2x128xf32>
    tpu.vector_store %arg4[%c0_188, %c1_189, %c0_190, %c0_191], %346 {strides = array<i32>} : memref<1x4x2x128xf32, #tpu.memory_space<vmem>>, vector<1x1x2x128xf32>,
    %c0_192 = arith.constant 0 : index
    %c2_193 = arith.constant 2 : index
    %c0_194 = arith.constant 0 : index
    %c0_195 = arith.constant 0 : index
    %347 = vector.load %arg4[%c0_192, %c2_193, %c0_194, %c0_195] : memref<1x4x2x128xf32, #tpu.memory_space<vmem>>, vector<1x1x2x128xf32>
    %348 = vector.shape_cast %347 : vector<1x1x2x128xf32> to vector<2x128xf32>
    %349 = arith.addf %348, %334 : vector<2x128xf32>
    %c0_196 = arith.constant 0 : index
    %c2_197 = arith.constant 2 : index
    %c0_198 = arith.constant 0 : index
    %c0_199 = arith.constant 0 : index
    %350 = vector.load %arg4[%c0_196, %c2_197, %c0_198, %c0_199] : memref<1x4x2x128xf32, #tpu.memory_space<vmem>>, vector<1x1x2x128xf32>
    %351 = vector.shape_cast %350 : vector<1x1x2x128xf32> to vector<2x128xf32>
    %352 = vector.shape_cast %349 : vector<2x128xf32> to vector<1x1x2x128xf32>
    tpu.vector_store %arg4[%c0_196, %c2_197, %c0_198, %c0_199], %352 {strides = array<i32>} : memref<1x4x2x128xf32, #tpu.memory_space<vmem>>, vector<1x1x2x128xf32>,
    %c0_200 = arith.constant 0 : index
    %c3_201 = arith.constant 3 : index
    %c0_202 = arith.constant 0 : index
    %c0_203 = arith.constant 0 : index
    %353 = vector.load %arg4[%c0_200, %c3_201, %c0_202, %c0_203] : memref<1x4x2x128xf32, #tpu.memory_space<vmem>>, vector<1x1x2x128xf32>
    %354 = vector.shape_cast %353 : vector<1x1x2x128xf32> to vector<2x128xf32>
    %355 = arith.extui %87 : vector<2x128xi1> to vector<2x128xi32>
    %356 = arith.sitofp %355 : vector<2x128xi32> to vector<2x128xf32>
    %357 = arith.addf %354, %356 : vector<2x128xf32>
    %c0_204 = arith.constant 0 : index
    %c3_205 = arith.constant 3 : index
    %c0_206 = arith.constant 0 : index
    %c0_207 = arith.constant 0 : index
    %358 = vector.load %arg4[%c0_204, %c3_205, %c0_206, %c0_207] : memref<1x4x2x128xf32, #tpu.memory_space<vmem>>, vector<1x1x2x128xf32>
    %359 = vector.shape_cast %358 : vector<1x1x2x128xf32> to vector<2x128xf32>
    %360 = vector.shape_cast %357 : vector<2x128xf32> to vector<1x1x2x128xf32>
    tpu.vector_store %arg4[%c0_204, %c3_205, %c0_206, %c0_207], %360 {strides = array<i32>} : memref<1x4x2x128xf32, #tpu.memory_space<vmem>>, vector<1x1x2x128xf32>,
    return
  }
  func.func @transform_0(%arg0: i32, %arg1: i32) -> (i32, i32, i32, i32) {
    %c0_i32 = arith.constant 0 : i32
    %c0_i32_0 = arith.constant 0 : i32
    %c0_i32_1 = arith.constant 0 : i32
    return %arg0, %c0_i32, %arg1, %c0_i32_0 : i32, i32, i32, i32
  }
  func.func @transform_1(%arg0: i32, %arg1: i32) -> (i32, i32, i32, i32) {
    %c0_i32 = arith.constant 0 : i32
    %c0_i32_0 = arith.constant 0 : i32
    %c0_i32_1 = arith.constant 0 : i32
    return %arg0, %c0_i32, %arg1, %c0_i32_0 : i32, i32, i32, i32
  }
  func.func @transform_2(%arg0: i32, %arg1: i32) -> (i32, i32, i32, i32) {
    %c0_i32 = arith.constant 0 : i32
    %c0_i32_0 = arith.constant 0 : i32
    %c0_i32_1 = arith.constant 0 : i32
    %c0_i32_2 = arith.constant 0 : i32
    return %arg0, %c0_i32, %c0_i32_0, %c0_i32_1 : i32, i32, i32, i32
  }
}

</mosaic_0001>

<llo_original>
// kernel: tpu_custom_call.1
$region0: #{tpu_custom_call.1}
  #allocation0 [shape = 'u32[]', space=smem, size = 0x4, offset = 0x4, fixed_abs, tag = 'smem constant byte address 0x4 - core index']
  #allocation1 [shape = 'u32[144,128]{1,0:T(1,128)}', space=vmem, size = 0x12000, scoped, tag = 'internal scratch']
  %s0 = inlined_call_operand.hbm [shape: f32[6,13,2,128], index: 0, kind: input, shape index: {}]
  %s1 = inlined_call_operand.hbm [shape: f32[6,13,2,128], index: 1, kind: input, shape index: {}]
  %s2 = inlined_call_operand.hbm [shape: f32[6,4,2,128], index: 2, kind: output, shape index: {}]
  %s3 = sld [smem:[#allocation0]]
  $region53: #{tpu_custom_call.1} parent=0
    _
  %s5 = ssub.s32 1, %s3
  %s6 = scalar_select 0, %s5, %s3
  $region1: #{tpu_custom_call.1} parent=0
    #allocation2 [shape = 'u8[26624]{0}', space=vmem, size = 0x6800, scoped, tag = 'input window, operand 0']
    #allocation3 [shape = 's32[2]{0}', space=sflag, size = 0x8, scoped, tag = 'scoped memory for tpu_custom_call.1']
    #allocation4 [shape = 's32[2]{0}', space=sflag, size = 0x8, scoped, tag = 'scoped memory for tpu_custom_call.1']
    #allocation5 [shape = 'u8[26624]{0}', space=vmem, size = 0x6800, scoped, tag = 'input window, operand 1']
    #allocation6 [shape = 's32[2]{0}', space=sflag, size = 0x8, scoped, tag = 'scoped memory for tpu_custom_call.1']
    #allocation7 [shape = 'u8[8192]{0}', space=vmem, size = 0x2000, scoped, tag = 'output window, operand 0']
    %7 = vsyncpa [#allocation3], 0
    %s8 = scalar_lea.sflag [#allocation3], 1
    %9 = vsyncpa %s8, 0
    %10 = vsyncpa [#allocation6], 0
    %s11 = scalar_lea.sflag [#allocation6], 1
    %12 = vsyncpa %s11, 0
    %13 = vsyncpa [#allocation4], 0
    %s14 = scalar_lea.sflag [#allocation4], 1
    %15 = vsyncpa %s14, 0
    loop: start=0, step=1, limit=8
    $region2: #{tpu_custom_call.1} parent=1 // loop_pre_header
      _
    $region3: #{tpu_custom_call.1} parent=1 // loop_header
      %s17 = sphi 0, %s21
      %p18 = scmp.ge.s32.totalorder %s17, 8
      %s24 = sphi 0, %s36
      %s25 = sphi 0, %s32
      %s26 = sphi 0, %s24
      %s27 = sphi 0, %s25
      %s28 = sphi 0, %s26
      %s29 = sphi 0, %s27
      %s41 = sphi 0, %s43
      %s44 = sphi 0, %s41
      %s45 = sphi 0, %s44
      %s61 = sphi 0, %s45
      %s69 = sphi 0, %s71
      %s72 = sphi 0, %s69
      %s73 = sphi 0, %s72
      %s89 = sphi 0, %s73
      %s95 = sphi 0, %s97
      %s98 = sphi 0, %s95
      %s99 = sphi 0, %s98
      %s115 = sphi 0, %s99
    $region4: #{tpu_custom_call.1} parent=1 // loop_header_branch
      %20 = sbr.rel (%p18) target = $region8
    $region5: #{tpu_custom_call.1} parent=1 // loop_body
      %s22 = ssub.s32 %s17, 1
      %s23 = ssub.s32 %s17, 2
      %s30 = sadd.s32 1, %s25
      %p31 = scmp.ge.s32.totalorder %s30, 1
      %s32 = scalar_select %p31, 0, %s30
      %s33 = sadd.s32 1, %s24
      %s34 = scalar_select %p31, %s33, %s24
      %p35 = scmp.ge.s32.totalorder %s34, 6
      %s36 = scalar_select %p35, 0, %s34
      %s37 = ssub.s32 %s24, %s36
      %s38 = ssub.s32 %s25, %s32
      %s39 = sor.u32 %s37, %s38
      %p40 = scmp.eq.s32.totalorder %s39, 0
      %s42 = sadd.s32 %s41, 1
      %s43 = scalar_select %p40, %s41, %s42
      %p46 = pneg %p40
      %p47 = scmp.eq.s32.totalorder %s17, 5
      %p48 = por %p46, %p47
      %p49 = scmp.ne.s32.totalorder %s41, %s44
      %p50 = scmp.eq.s32.totalorder %s17, 0
      %p51 = por %p49, %p50
      %p52 = scmp.ne.s32.totalorder %s41, %s44
      %p53 = scmp.eq.s32.totalorder %s22, 5
      %p54 = por %p52, %p53
      %p55 = scmp.ne.s32.totalorder %s44, %s45
      %p56 = scmp.eq.s32.totalorder %s22, 0
      %p57 = por %p55, %p56
      %p58 = scmp.ne.s32.totalorder %s44, %s45
      %p59 = scmp.eq.s32.totalorder %s23, 5
      %p60 = por %p58, %p59
      %p62 = scmp.ne.s32.totalorder %s45, %s61
      %p63 = scmp.eq.s32.totalorder %s23, 0
      %p64 = por %p62, %p63
      %s65 = ssub.s32 %s24, %s36
      %s66 = ssub.s32 %s25, %s32
      %s67 = sor.u32 %s65, %s66
      %p68 = scmp.eq.s32.totalorder %s67, 0
      %s70 = sadd.s32 %s69, 1
      %s71 = scalar_select %p68, %s69, %s70
      %p74 = pneg %p68
      %p75 = scmp.eq.s32.totalorder %s17, 5
      %p76 = por %p74, %p75
      %p77 = scmp.ne.s32.totalorder %s69, %s72
      %p78 = scmp.eq.s32.totalorder %s17, 0
      %p79 = por %p77, %p78
      %p80 = scmp.ne.s32.totalorder %s69, %s72
      %p81 = scmp.eq.s32.totalorder %s22, 5
      %p82 = por %p80, %p81
      %p83 = scmp.ne.s32.totalorder %s72, %s73
      %p84 = scmp.eq.s32.totalorder %s22, 0
      %p85 = por %p83, %p84
      %p86 = scmp.ne.s32.totalorder %s72, %s73
      %p87 = scmp.eq.s32.totalorder %s23, 5
      %p88 = por %p86, %p87
      %p90 = scmp.ne.s32.totalorder %s73, %s89
      %p91 = scmp.eq.s32.totalorder %s23, 0
      %p92 = por %p90, %p91
      %s93 = ssub.s32 %s24, %s36
      %p94 = scmp.eq.s32.totalorder %s93, 0
      %s96 = sadd.s32 %s95, 1
      %s97 = scalar_select %p94, %s95, %s96
      %p100 = pneg %p94
      %p101 = scmp.eq.s32.totalorder %s17, 5
      %p102 = por %p100, %p101
      %p103 = scmp.ne.s32.totalorder %s95, %s98
      %p104 = scmp.eq.s32.totalorder %s17, 0
      %p105 = por %p103, %p104
      %p106 = scmp.ne.s32.totalorder %s95, %s98
      %p107 = scmp.eq.s32.totalorder %s22, 5
      %p108 = por %p106, %p107
      %p109 = scmp.ne.s32.totalorder %s98, %s99
      %p110 = scmp.eq.s32.totalorder %s22, 0
      %p111 = por %p109, %p110
      %p112 = scmp.ne.s32.totalorder %s98, %s99
      %p113 = scmp.eq.s32.totalorder %s23, 5
      %p114 = por %p112, %p113
      %p116 = scmp.ne.s32.totalorder %s99, %s115
      %p117 = scmp.eq.s32.totalorder %s23, 0
      %p118 = por %p116, %p117
      %p119 = scmp.le.s32.totalorder 1, %s17
      %p120 = scmp.lt.s32.totalorder %s17, 7
      %p121 = pnand %p119, %p120
      %p122 = pneg %p121
      // Predicated region
      $region9: #{tpu_custom_call.1} parent=5 // pred_check
        _
      $region10: #{tpu_custom_call.1} parent=5 // pred_check_branch
        %124 = sbr.rel (%p121) target = $region12
      $region11: #{tpu_custom_call.1} parent=5 // pred_region
        %s125 = ssub.s32 %s17, 1
      $region12: #{tpu_custom_call.1} parent=5 // pred_fallthru
        _
      %p126 = scmp.lt.s32.totalorder %s17, 6
      // Predicated region
      $region13: #{tpu_custom_call.1} parent=5 // pred_check
        %p127 = pneg %p126
      $region14: #{tpu_custom_call.1} parent=5 // pred_check_branch
        %129 = sbr.rel (%p127) target = $region16
      $region15: #{tpu_custom_call.1} parent=5 // pred_region
        // Predicated region
        $region17: #{tpu_custom_call.1} parent=15 // pred_check
          %p130 = pneg %p51
        $region18: #{tpu_custom_call.1} parent=15 // pred_check_branch
          %132 = sbr.rel (%p130) target = $region20
        $region19: #{tpu_custom_call.1} parent=15 // pred_region
          %s133 = sand.u32 %s41, 1
          %s134 = scalar_lea.sflag [#allocation3], %s133
          %s135 = sand.u32 %s41, 1
          %s136 = smul.addr %s135, 26
          %s137 = scalar_lea.vmem [#allocation2], %s136
          %s139 = ssub.s32 416, 416
          %140 = vsyncadd %s134, %s139
          %s141 = smul.addr %s24, 13
          %s142 = sadd.s32 %s25, %s141
          %s143 = smul.addr %s142, 32
          %s144 = scalar_lea.hbm %s0, %s143
          %s145 = sshll.u32 %s137, 4
          %s146 = int_to_ptr.vmem [resolvable:$true] %s145
          %151 = dma.hbm_to_vmem [thread:$0]  %s144, 416, %s146, %s134, 32, 32, 2
        $region20: #{tpu_custom_call.1} parent=15 // pred_fallthru
          _
        // Predicated region
        $region21: #{tpu_custom_call.1} parent=15 // pred_check
          %p152 = pneg %p79
        $region22: #{tpu_custom_call.1} parent=15 // pred_check_branch
          %154 = sbr.rel (%p152) target = $region24
        $region23: #{tpu_custom_call.1} parent=15 // pred_region
          %s155 = sand.u32 %s69, 1
          %s156 = scalar_lea.sflag [#allocation6], %s155
          %s157 = sand.u32 %s69, 1
          %s158 = smul.addr %s157, 26
          %s159 = scalar_lea.vmem [#allocation5], %s158
          %s161 = ssub.s32 416, 416
          %162 = vsyncadd %s156, %s161
          %s163 = smul.addr %s24, 13
          %s164 = sadd.s32 %s25, %s163
          %s165 = smul.addr %s164, 32
          %s166 = scalar_lea.hbm %s1, %s165
          %s167 = sshll.u32 %s159, 4
          %s168 = int_to_ptr.vmem [resolvable:$true] %s167
          %173 = dma.hbm_to_vmem [thread:$0]  %s166, 416, %s168, %s156, 32, 32, 2
        $region24: #{tpu_custom_call.1} parent=15 // pred_fallthru
          _
      $region16: #{tpu_custom_call.1} parent=5 // pred_fallthru
        _
      %p174 = scmp.le.s32.totalorder 1, %s17
      %p175 = scmp.lt.s32.totalorder %s17, 7
      %p176 = pnand %p174, %p175
      %p177 = pneg %p176
      // Predicated region
      $region25: #{tpu_custom_call.1} parent=5 // pred_check
        _
      $region26: #{tpu_custom_call.1} parent=5 // pred_check_branch
        %179 = sbr.rel (%p176) target = $region28
      $region27: #{tpu_custom_call.1} parent=5 // pred_region
        %s180 = ssub.s32 %s17, 1
        %s181 = sand.u32 %s44, 1
        %s182 = scalar_lea.sflag [#allocation3], %s181
        %s183 = sand.u32 %s44, 1
        %s184 = smul.addr %s183, 26
        %s185 = scalar_lea.vmem [#allocation2], %s184
        // Predicated region
        $region29: #{tpu_custom_call.1} parent=27 // pred_check
          %p186 = pneg %p57
        $region30: #{tpu_custom_call.1} parent=27 // pred_check_branch
          %188 = sbr.rel (%p186) target = $region32
        $region31: #{tpu_custom_call.1} parent=27 // pred_region
          %189 = dma.done %s182, 416
        $region32: #{tpu_custom_call.1} parent=27 // pred_fallthru
          _
        %s190 = sand.u32 %s72, 1
        %s191 = scalar_lea.sflag [#allocation6], %s190
        %s192 = sand.u32 %s72, 1
        %s193 = smul.addr %s192, 26
        %s194 = scalar_lea.vmem [#allocation5], %s193
        // Predicated region
        $region33: #{tpu_custom_call.1} parent=27 // pred_check
          %p195 = pneg %p85
        $region34: #{tpu_custom_call.1} parent=27 // pred_check_branch
          %197 = sbr.rel (%p195) target = $region36
        $region35: #{tpu_custom_call.1} parent=27 // pred_region
          %198 = dma.done %s191, 416
        $region36: #{tpu_custom_call.1} parent=27 // pred_fallthru
          _
        %s199 = sand.u32 %s44, 1
        %s200 = scalar_lea.sflag [#allocation3], %s199
        %s201 = sand.u32 %s44, 1
        %s202 = smul.addr %s201, 26
        %s203 = scalar_lea.vmem [#allocation2], %s202
        %p204 = pneg %p57
        %p205 = pneg %p54
        %s206 = sand.u32 %s72, 1
        %s207 = scalar_lea.sflag [#allocation6], %s206
        %s208 = sand.u32 %s72, 1
        %s209 = smul.addr %s208, 26
        %s210 = scalar_lea.vmem [#allocation5], %s209
        %p211 = pneg %p85
        %p212 = pneg %p82
        %p213 = pneg %p111
        %p214 = pneg %p108
        %s215 = sand.u32 %s98, 1
        %s216 = scalar_lea.sflag [#allocation4], %s215
        %s217 = sand.u32 %s98, 1
        %s218 = smul.addr %s217, 8
        %s219 = scalar_lea.vmem [#allocation7], %s218
        %p220 = scmp.lt.s32.totalorder %s26, 0
        %s221 = ssub.s32 0, %s26
        %s222 = scalar_select %p220, %s221, %s26
        %s223 = sdiv.u32.pop %s222, 3
        %s224 = srem.u32.pop %s222, 3
        %s225 = ssub.s32 0, %s224
        %s226 = scalar_select %p220, %s225, %s224
        %p227 = scmp.ne.s32.totalorder %s226, 0
        %p228 = scmp.lt.s32.totalorder %s226, 0
        %p229 = pnand %p228, %p227
        %p230 = pneg %p229
        %s231 = sadd.s32 %s226, 3
        %s232 = scalar_select %p230, %s231, %s226
        %p233 = scmp.eq.s32.totalorder %s27, 0
        // Predicated region
        $region37: #{tpu_custom_call.1} parent=27 // pred_check
          %p234 = pneg %p233
        $region38: #{tpu_custom_call.1} parent=27 // pred_check_branch
          %236 = sbr.rel (%p234) target = $region40
        $region39: #{tpu_custom_call.1} parent=27 // pred_region
          %237 = vst [vmem:[%s219] sm:$0x3] 0.0
          %238 = vst [vmem:[%s219 + $0x2] sm:$0x3] 0.0
          %239 = vst [vmem:[%s219 + $0x4] sm:$0x3] 0.0
          %240 = vst [vmem:[%s219 + $0x6] sm:$0x3] 0.0
        $region40: #{tpu_custom_call.1} parent=27 // pred_fallthru
          _
        %p241 = scmp.eq.s32.totalorder %s232, 1
        %s242 = scalar_select %p241, 19.5, 14.5
        %s243 = scalar_select %p241, 24.75, 11.25
        %p244 = scmp.eq.s32.totalorder %s232, 2
        %s245 = scalar_select %p244, 46.625, %s242
        %s246 = scalar_select %p244, 40.75, %s243
        %v247 = vlaneseq
        %v248 = vshrl.u32 %v247, 7
        %v249 = vlaneseq
        %v250 = vand.u32 %v249, 127
        %s251 = smul.u32 %s27, 2
        %v252 = vstv %s251
        %v253 = vadd.s32 %v252, %v248
        %v254 = vmul.u32 %v253, 128
        %v255 = vadd.s32 %v254, %v250
        %v256 = vcvt.s32.f32 %v255
        %v257 = vadd.f32 %v256, 0.5
        %v258 = vmul.f32 %v257, 0.0625
        %v259 = vfloor.f32 %v258
        %v260 = vmul.f32 %v259, 16.0
        %v261 = vsub.f32 %v256, %v260
        %v262 = vld [vmem:[%s185] sm:$0x3]
        %v263 = vmul.f32 %v262, 0.5
        %v264 = vtanh.pop %v263
        %v265 = vmul.f32 %v264, 0.5
        %v266 = vadd.f32 %v265, 0.5
        %s267 = scalar_lea.vmem %s185, 2 [#allocation2]
        %v268 = vld [vmem:[%s267] sm:$0x3]
        %v269 = vmul.f32 %v268, 0.5
        %v270 = vtanh.pop %v269
        %v271 = vmul.f32 %v270, 0.5
        %v272 = vadd.f32 %v271, 0.5
        %s273 = scalar_lea.vmem %s185, 4 [#allocation2]
        %v274 = vld [vmem:[%s273] sm:$0x3]
        %v275 = vmul.f32 %v274, 0.5
        %v276 = vtanh.pop %v275
        %v277 = vmul.f32 %v276, 0.5
        %v278 = vadd.f32 %v277, 0.5
        %s279 = scalar_lea.vmem %s185, 6 [#allocation2]
        %v280 = vld [vmem:[%s279] sm:$0x3]
        %v281 = vmul.f32 %v280, 0.5
        %v282 = vtanh.pop %v281
        %v283 = vmul.f32 %v282, 0.5
        %v284 = vadd.f32 %v283, 0.5
        %s285 = scalar_lea.vmem %s185, 8 [#allocation2]
        %v286 = vld [vmem:[%s285] sm:$0x3]
        %v287 = vld [vmem:[%s194] sm:$0x3]
        %s288 = scalar_lea.vmem %s194, 2 [#allocation5]
        %v289 = vld [vmem:[%s288] sm:$0x3]
        %s290 = scalar_lea.vmem %s194, 4 [#allocation5]
        %v291 = vld [vmem:[%s290] sm:$0x3]
        %s292 = scalar_lea.vmem %s194, 6 [#allocation5]
        %v293 = vld [vmem:[%s292] sm:$0x3]
        %s294 = scalar_lea.vmem %s194, 8 [#allocation5]
        %v295 = vld [vmem:[%s294] sm:$0x3]
        %vm296 = vcmp.eq.f32.partialorder %v295, 1.0
        %v297 = vmul.f32 %v266, 2.0
        %v298 = vsub.f32 %v297, 0.5
        %v299 = vadd.f32 %v298, %v261
        %v300 = vmul.f32 %v272, 2.0
        %v301 = vsub.f32 %v300, 0.5
        %v302 = vadd.f32 %v301, %v259
        %v303 = vmul.f32 %v278, 2.0
        %v304 = vmul.f32 %v303, %v303
        %v305 = vstv %s245
        %v306 = vmul.f32 %v304, %v305
        %v307 = vmul.f32 %v284, 2.0
        %v308 = vmul.f32 %v307, %v307
        %v309 = vstv %s246
        %v310 = vmul.f32 %v308, %v309
        %v311 = vmul.f32 %v306, 0.5
        %v312 = vsub.f32 %v299, %v311
        %v313 = vadd.f32 %v299, %v311
        %v314 = vmul.f32 %v310, 0.5
        %v315 = vsub.f32 %v302, %v314
        %v316 = vadd.f32 %v302, %v314
        %v317 = vmul.f32 %v291, 0.5
        %v318 = vsub.f32 %v287, %v317
        %v319 = vadd.f32 %v287, %v317
        %v320 = vmul.f32 %v293, 0.5
        %v321 = vsub.f32 %v289, %v320
        %v322 = vadd.f32 %v289, %v320
        %v323 = vmin.f32 %v313, %v319
        %v324 = vmax.f32 %v312, %v318
        %v325 = vsub.f32 %v323, %v324
        %v326 = vmax.f32 %v325, 0.0
        %v327 = vmin.f32 %v316, %v322
        %v328 = vmax.f32 %v315, %v321
        %v329 = vsub.f32 %v327, %v328
        %v330 = vmax.f32 %v329, 0.0
        %v331 = vmul.f32 %v326, %v330
        %v332 = vmul.f32 %v306, %v310
        %v333 = vmul.f32 %v291, %v293
        %v334 = vadd.f32 %v332, %v333
        %v335 = vsub.f32 %v334, %v331
        %v336 = vadd.f32 %v335, 1e-07
        %v337 = vrcp.pop %v336
        %v338 = vmul.f32 %v336, %v337
        %v339 = vsub.f32 2.0, %v338
        %v340 = vmul.f32 %v337, %v339
        %v341 = vmul.f32 %v331, %v340
        %v342 = vmax.f32 %v313, %v319
        %v343 = vmin.f32 %v312, %v318
        %v344 = vsub.f32 %v342, %v343
        %v345 = vmax.f32 %v344, 0.0
        %v346 = vmax.f32 %v316, %v322
        %v347 = vmin.f32 %v315, %v321
        %v348 = vsub.f32 %v346, %v347
        %v349 = vmax.f32 %v348, 0.0
        %v350 = vmul.f32 %v345, %v349
        %v351 = vsub.f32 %v350, %v335
        %v352 = vadd.f32 %v350, 1e-07
        %v353 = vrcp.pop %v352
        %v354 = vmul.f32 %v352, %v353
        %v355 = vsub.f32 2.0, %v354
        %v356 = vmul.f32 %v353, %v355
        %v357 = vmul.f32 %v351, %v356
        %v358 = vsub.f32 %v341, %v357
        %v359 = vsub.f32 1.0, %v358
        %v360 = vsel %vm296, %v359, 0.0
        %s361 = scalar_lea.vmem %s185, 10 [#allocation2]
        %v362 = vld [vmem:[%s361] sm:$0x3]
        %s363 = scalar_lea.vmem %s194, 10 [#allocation5]
        %v364 = vld [vmem:[%s363] sm:$0x3]
        %v365 = vmax.f32 %v362, 0.0
        %v366 = vmul.f32 %v362, %v364
        %v367 = vsub.f32 %v365, %v366
        %v368 = vand.u32 2147483647, %v362
        %v369 = vsub.f32 0.0, %v368
        %v370 = vmul.f32 %v369, 1.442695
        %v371 = vpow.pop %v370
        %v372 = vadd.f32 %v371, 1.0
        %v373 = vlog2.pop %v372
        %v374 = vmul.f32 %v373, 0.6931472
        %v375 = vadd.f32 %v367, %v374
        %v376 = vadd.f32 %v375, 0.0
        %s377 = scalar_lea.vmem %s185, 12 [#allocation2]
        %v378 = vld [vmem:[%s377] sm:$0x3]
        %s379 = scalar_lea.vmem %s194, 12 [#allocation5]
        %v380 = vld [vmem:[%s379] sm:$0x3]
        %v381 = vmax.f32 %v378, 0.0
        %v382 = vmul.f32 %v378, %v380
        %v383 = vsub.f32 %v381, %v382
        %v384 = vand.u32 2147483647, %v378
        %v385 = vsub.f32 0.0, %v384
        %v386 = vmul.f32 %v385, 1.442695
        %v387 = vpow.pop %v386
        %v388 = vadd.f32 %v387, 1.0
        %v389 = vlog2.pop %v388
        %v390 = vmul.f32 %v389, 0.6931472
        %v391 = vadd.f32 %v383, %v390
        %v392 = vadd.f32 %v376, %v391
        %s393 = scalar_lea.vmem %s185, 14 [#allocation2]
        %v394 = vld [vmem:[%s393] sm:$0x3]
        %s395 = scalar_lea.vmem %s194, 14 [#allocation5]
        %v396 = vld [vmem:[%s395] sm:$0x3]
        %v397 = vmax.f32 %v394, 0.0
        %v398 = vmul.f32 %v394, %v396
        %v399 = vsub.f32 %v397, %v398
        %v400 = vand.u32 2147483647, %v394
        %v401 = vsub.f32 0.0, %v400
        %v402 = vmul.f32 %v401, 1.442695
        %v403 = vpow.pop %v402
        %v404 = vadd.f32 %v403, 1.0
        %v405 = vlog2.pop %v404
        %v406 = vmul.f32 %v405, 0.6931472
        %v407 = vadd.f32 %v399, %v406
        %v408 = vadd.f32 %v392, %v407
        %s409 = scalar_lea.vmem %s185, 16 [#allocation2]
        %v410 = vld [vmem:[%s409] sm:$0x3]
        %s411 = scalar_lea.vmem %s194, 16 [#allocation5]
        %v412 = vld [vmem:[%s411] sm:$0x3]
        %v413 = vmax.f32 %v410, 0.0
        %v414 = vmul.f32 %v410, %v412
        %v415 = vsub.f32 %v413, %v414
        %v416 = vand.u32 2147483647, %v410
        %v417 = vsub.f32 0.0, %v416
        %v418 = vmul.f32 %v417, 1.442695
        %v419 = vpow.pop %v418
        %v420 = vadd.f32 %v419, 1.0
        %v421 = vlog2.pop %v420
        %v422 = vmul.f32 %v421, 0.6931472
        %v423 = vadd.f32 %v415, %v422
        %v424 = vadd.f32 %v408, %v423
        %s425 = scalar_lea.vmem %s185, 18 [#allocation2]
        %v426 = vld [vmem:[%s425] sm:$0x3]
        %s427 = scalar_lea.vmem %s194, 18 [#allocation5]
        %v428 = vld [vmem:[%s427] sm:$0x3]
        %v429 = vmax.f32 %v426, 0.0
        %v430 = vmul.f32 %v426, %v428
        %v431 = vsub.f32 %v429, %v430
        %v432 = vand.u32 2147483647, %v426
        %v433 = vsub.f32 0.0, %v432
        %v434 = vmul.f32 %v433, 1.442695
        %v435 = vpow.pop %v434
        %v436 = vadd.f32 %v435, 1.0
        %v437 = vlog2.pop %v436
        %v438 = vmul.f32 %v437, 0.6931472
        %v439 = vadd.f32 %v431, %v438
        %v440 = vadd.f32 %v424, %v439
        %s441 = scalar_lea.vmem %s185, 20 [#allocation2]
        %v442 = vld [vmem:[%s441] sm:$0x3]
        %s443 = scalar_lea.vmem %s194, 20 [#allocation5]
        %v444 = vld [vmem:[%s443] sm:$0x3]
        %v445 = vmax.f32 %v442, 0.0
        %v446 = vmul.f32 %v442, %v444
        %v447 = vsub.f32 %v445, %v446
        %v448 = vand.u32 2147483647, %v442
        %v449 = vsub.f32 0.0, %v448
        %v450 = vmul.f32 %v449, 1.442695
        %v451 = vpow.pop %v450
        %v452 = vadd.f32 %v451, 1.0
        %v453 = vlog2.pop %v452
        %v454 = vmul.f32 %v453, 0.6931472
        %v455 = vadd.f32 %v447, %v454
        %v456 = vadd.f32 %v440, %v455
        %s457 = scalar_lea.vmem %s185, 22 [#allocation2]
        %v458 = vld [vmem:[%s457] sm:$0x3]
        %s459 = scalar_lea.vmem %s194, 22 [#allocation5]
        %v460 = vld [vmem:[%s459] sm:$0x3]
        %v461 = vmax.f32 %v458, 0.0
        %v462 = vmul.f32 %v458, %v460
        %v463 = vsub.f32 %v461, %v462
        %v464 = vand.u32 2147483647, %v458
        %v465 = vsub.f32 0.0, %v464
        %v466 = vmul.f32 %v465, 1.442695
        %v467 = vpow.pop %v466
        %v468 = vadd.f32 %v467, 1.0
        %v469 = vlog2.pop %v468
        %v470 = vmul.f32 %v469, 0.6931472
        %v471 = vadd.f32 %v463, %v470
        %v472 = vadd.f32 %v456, %v471
        %s473 = scalar_lea.vmem %s185, 24 [#allocation2]
        %v474 = vld [vmem:[%s473] sm:$0x3]
        %s475 = scalar_lea.vmem %s194, 24 [#allocation5]
        %v476 = vld [vmem:[%s475] sm:$0x3]
        %v477 = vmax.f32 %v474, 0.0
        %v478 = vmul.f32 %v474, %v476
        %v479 = vsub.f32 %v477, %v478
        %v480 = vand.u32 2147483647, %v474
        %v481 = vsub.f32 0.0, %v480
        %v482 = vmul.f32 %v481, 1.442695
        %v483 = vpow.pop %v482
        %v484 = vadd.f32 %v483, 1.0
        %v485 = vlog2.pop %v484
        %v486 = vmul.f32 %v485, 0.6931472
        %v487 = vadd.f32 %v479, %v486
        %v488 = vadd.f32 %v472, %v487
        %v489 = vsel %vm296, %v488, 0.0
        %v490 = vmax.f32 %v358, 0.0
        %v491 = vsel %vm296, %v490, 0.0
        %v492 = vmax.f32 %v286, 0.0
        %v493 = vmul.f32 %v286, %v491
        %v494 = vsub.f32 %v492, %v493
        %v495 = vand.u32 2147483647, %v286
        %v496 = vsub.f32 0.0, %v495
        %v497 = vmul.f32 %v496, 1.442695
        %v498 = vpow.pop %v497
        %v499 = vadd.f32 %v498, 1.0
        %v500 = vlog2.pop %v499
        %v501 = vmul.f32 %v500, 0.6931472
        %v502 = vadd.f32 %v494, %v501
        %v503 = vld [vmem:[%s219] sm:$0x3]
        %v504 = vadd.f32 %v503, %v360
        %505 = vst [vmem:[%s219] sm:$0x3] %v504
        %s506 = scalar_lea.vmem %s219, 2 [#allocation7]
        %v507 = vld [vmem:[%s506] sm:$0x3]
        %v508 = vadd.f32 %v507, %v489
        %509 = vst [vmem:[%s506] sm:$0x3] %v508
        %s510 = scalar_lea.vmem %s219, 4 [#allocation7]
        %v511 = vld [vmem:[%s510] sm:$0x3]
        %v512 = vadd.f32 %v511, %v502
        %513 = vst [vmem:[%s510] sm:$0x3] %v512
        %s514 = scalar_lea.vmem %s219, 6 [#allocation7]
        %v515 = vld [vmem:[%s514] sm:$0x3]
        %v516 = vsel %vm296, 1, 0
        %v517 = vcvt.s32.f32 %v516
        %v518 = vadd.f32 %v515, %v517
        %519 = vst [vmem:[%s514] sm:$0x3] %v518
        %s520 = sand.u32 %s98, 1
        %s521 = scalar_lea.sflag [#allocation4], %s520
        %s522 = sand.u32 %s98, 1
        %s523 = smul.addr %s522, 8
        %s524 = scalar_lea.vmem [#allocation7], %s523
        // Predicated region
        $region41: #{tpu_custom_call.1} parent=27 // pred_check
          %p525 = pneg %p108
        $region42: #{tpu_custom_call.1} parent=27 // pred_check_branch
          %527 = sbr.rel (%p525) target = $region44
        $region43: #{tpu_custom_call.1} parent=27 // pred_region
          %s529 = ssub.s32 128, 128
          %530 = vsyncadd %s521, %s529
          %s531 = smul.addr %s26, 4
          %s532 = smul.addr %s531, 32
          %s533 = scalar_lea.hbm %s2, %s532
          %s534 = sshll.u32 %s524, 4
          %s535 = int_to_ptr.vmem [resolvable:$true] %s534
          %540 = dma.vmem_to_hbm [thread:$0]  %s535, 128, %s533, %s521, 32, 32, 2
        $region44: #{tpu_custom_call.1} parent=27 // pred_fallthru
          _
      $region28: #{tpu_custom_call.1} parent=5 // pred_fallthru
        _
      %p541 = scmp.le.s32.totalorder 2, %s17
      // Predicated region
      $region45: #{tpu_custom_call.1} parent=5 // pred_check
        %p542 = pneg %p541
      $region46: #{tpu_custom_call.1} parent=5 // pred_check_branch
        %544 = sbr.rel (%p542) target = $region48
      $region47: #{tpu_custom_call.1} parent=5 // pred_region
        %s545 = ssub.s32 %s17, 2
        // Predicated region
        $region49: #{tpu_custom_call.1} parent=47 // pred_check
          %p546 = pneg %p114
        $region50: #{tpu_custom_call.1} parent=47 // pred_check_branch
          %548 = sbr.rel (%p546) target = $region52
        $region51: #{tpu_custom_call.1} parent=47 // pred_region
          %s549 = sand.u32 %s99, 1
          %s550 = scalar_lea.sflag [#allocation4], %s549
          %s551 = sand.u32 %s99, 1
          %s552 = smul.addr %s551, 8
          %s553 = scalar_lea.vmem [#allocation7], %s552
          %554 = dma.done %s550, 128
        $region52: #{tpu_custom_call.1} parent=47 // pred_fallthru
          _
      $region48: #{tpu_custom_call.1} parent=5 // pred_fallthru
        _
    $region6: #{tpu_custom_call.1} parent=1 // loop_footer
      %s21 = sadd.s32 1, %s17
    $region7: #{tpu_custom_call.1} parent=1 // loop_footer_branch
      %16 = sbr.rel target = $region3
    $region8: #{tpu_custom_call.1} parent=1 // loop_exit
      _
    %555 = vsyncpa [#allocation3], 1
    %s556 = scalar_lea.sflag [#allocation3], 1
    %557 = vsyncpa %s556, 1
    %558 = vsyncpa [#allocation6], 1
    %s559 = scalar_lea.sflag [#allocation6], 1
    %560 = vsyncpa %s559, 1
    %561 = vsyncpa [#allocation4], 1
    %s562 = scalar_lea.sflag [#allocation4], 1
    %563 = vsyncpa %s562, 1

</llo_original>
